<compile_context>
chip_gen: v5e
topology: v5e:2x2
jax: 0.10.0
libtpu: 0.0.40
codegen_flags: <defaults>
</compile_context>

<pallas_src>
import jax
import jax.numpy as jnp
from jax.experimental import pallas as pl
from jax.experimental.pallas import tpu as pltpu

BN_EPS = 1e-5
W_IN = 8          # flattened feature width (linear1 = nn.Linear(8, 16))
N_OUT = 2         # linear2 = nn.Linear(16, 2)

# Named indices into the folded per-block scalar pack (shared by all 3 calls).
IDX_A1, IDX_C1 = 0, 1       # conv1+bn1 fold:   h -> A1*h + C1   (then ReLU)
IDX_A2, IDX_C2 = 2, 3       # conv2+bn2 fold
IDX_SA, IDX_SB = 4, 5       # shrink fc Linear(1,1)+BatchNorm1d(1) fold
IDX_SW2, IDX_SB2 = 6, 7     # shrink fc Linear(1,1) before Sigmoid
BLK_LEN = 8


def drsn_kernel(blk_ref, lwf_ref, lbf_ref, x_ref, o_ref):
    """blk_ref: SMEM f32[8]   folded DRSNBlock scalars (see IDX_* above)
       lwf_ref: SMEM f32[16]  fused linear weight, row-major (W_IN, N_OUT)
       lbf_ref: SMEM f32[2]   fused linear bias
       x_ref  : VMEM (8, TILE_N)   W on sublanes, batch on lanes
       o_ref  : VMEM (2, TILE_N)   lane-dense output"""
    h = x_ref[...].astype(jnp.float32)                       # (8, T)

    a1, c1 = blk_ref[IDX_A1], blk_ref[IDX_C1]
    a2, c2 = blk_ref[IDX_A2], blk_ref[IDX_C2]
    sa, sb = blk_ref[IDX_SA], blk_ref[IDX_SB]
    sw2, sb2 = blk_ref[IDX_SW2], blk_ref[IDX_SB2]

    def drsn_block(v):
        ident = v
        u = jnp.maximum(v * a1 + c1, 0.0)                    # conv1 + BN(eval) + ReLU
        u = jnp.maximum(u * a2 + c2, 0.0)                    # conv2 + BN(eval) + ReLU
        # Shrinkage: u >= 0 (post-ReLU), so |u| == u and
        # sign(u)*max(|u|-thr, 0) == max(u-thr, 0) exactly -> abs/sign dropped.
        avg = jnp.mean(u, axis=0, keepdims=True)             # GAP over W -> (1, T), XLU
        t = jnp.maximum(avg * sa + sb, 0.0)                  # Linear(1,1)+BN1d(eval)+ReLU
        gate = 1.0 / (1.0 + jnp.exp(-(t * sw2 + sb2)))       # Linear(1,1) + Sigmoid (EUP exp)
        shr = jnp.maximum(u - avg * gate, 0.0)               # soft threshold
        return jnp.maximum(ident + shr, 0.0)                 # residual + ReLU

    # self.block is called 3 times with SHARED weights in the PyTorch forward.
    h = drsn_block(drsn_block(drsn_block(h)))

    # Fused linear1∘linear2 (exact): y[c, :] = sum_w Wf[w, c] * h[w, :] + Bf[c]
    # Done as VPU scalar multiply-adds (batch stays dense on lanes).
    rows = [h[w:w + 1, :] for w in range(W_IN)]              # (1, T) sublane rows
    outs = []
    for c in range(N_OUT):
        acc = rows[0] * lwf_ref[0 * N_OUT + c] + lbf_ref[c]
        for w in range(1, W_IN):
            acc = acc + rows[w] * lwf_ref[w * N_OUT + c]
        outs.append(acc)
    o_ref[...] = jnp.concatenate(outs, axis=0).astype(o_ref.dtype)


def drsn_forward(x, params, tile_n=1024):
    """x: (N, ...) flattening to width 8.  Returns (N, 2)."""
    blk, lwf, lbf = params
    n = x.shape[0]
    x2 = x.reshape(n, -1).astype(jnp.float32)                # (N, 8): C=H=1 squeezed
    assert x2.shape[1] == W_IN, f"flattened width must be {W_IN}"

    # Lane-dense relayout: batch on lanes (tile is a multiple of 128).
    tile = min(tile_n, max(128, ((n + 127) // 128) * 128))
    n_pad = pl.cdiv(n, tile) * tile
    xt = jnp.transpose(x2)                                   # (8, N)
    if n_pad != n:
        xt = jnp.pad(xt, ((0, 0), (0, n_pad - n)))

    smem = pl.BlockSpec(memory_space=pltpu.MemorySpace.SMEM)
    out_t = pl.pallas_call(
        drsn_kernel,
        out_shape=jax.ShapeDtypeStruct((N_OUT, n_pad), jnp.float32),
        grid=(n_pad // tile,),
        in_specs=[
            smem,                                            # blk  f32[8]
            smem,                                            # lwf  f32[16]
            smem,                                            # lbf  f32[2]
            pl.BlockSpec((W_IN, tile), lambda i: (0, i)),    # x    (8, n_pad)
        ],
        out_specs=pl.BlockSpec((N_OUT, tile), lambda i: (0, i)),
        compiler_params=pltpu.CompilerParams(
            dimension_semantics=("parallel",),
            vmem_limit_bytes=32 * 1024 * 1024,
        ),
    )(blk, lwf, lbf, xt)
    return jnp.transpose(out_t[:, :n])                       # (N, 2)


def init_raw_params():
    """Deterministic synthetic parameters matching the module's shapes (raw/unfused)."""
    key = jax.random.PRNGKey(0)
    k1, k2 = jax.random.split(key)
    return dict(
        # conv1 (1x1, C=1): weight, bias; bn1: gamma, beta, running mean/var
        cw1=0.9, cb1=0.1, g1=1.05, be1=0.02, rm1=0.03, rv1=1.2,
        # conv2 + bn2
        cw2=1.1, cb2=-0.05, g2=0.98, be2=0.01, rm2=-0.02, rv2=0.8,
        # shrink.fc: Linear(1,1), BatchNorm1d(1), Linear(1,1)->Sigmoid
        fw1=0.7, fb1=0.05, gf=1.02, bef=0.01, rmf=0.02, rvf=0.9,
        fw2=0.6, fb2=-0.1,
        # nn.Linear(8,16)/(16,2): y = x @ W.T + b -> store W.T directly
        w1t=(0.01 * jax.random.normal(k1, (W_IN, 16))).astype(jnp.float32),
        b1=jnp.full((16,), 0.01, jnp.float32),
        w2t=(0.01 * jax.random.normal(k2, (16, N_OUT))).astype(jnp.float32),
        b2=jnp.full((N_OUT,), -0.02, jnp.float32),
    )


def fold_params(raw):
    """Host-side exact folds: conv+BN(eval) -> affine, fc+BN1d(eval) -> affine,
    linear1∘linear2 -> single (8->2) affine."""
    def conv_bn_fold(cw, cb, g, be, rm, rv):
        s = g / float((rv + BN_EPS) ** 0.5)
        return cw * s, (cb - rm) * s + be

    a1, c1 = conv_bn_fold(raw["cw1"], raw["cb1"], raw["g1"], raw["be1"],
                          raw["rm1"], raw["rv1"])
    a2, c2 = conv_bn_fold(raw["cw2"], raw["cb2"], raw["g2"], raw["be2"],
                          raw["rm2"], raw["rv2"])
    sf = raw["gf"] / float((raw["rvf"] + BN_EPS) ** 0.5)
    sa = raw["fw1"] * sf
    sb = (raw["fb1"] - raw["rmf"]) * sf + raw["bef"]
    blk = jnp.array([a1, c1, a2, c2, sa, sb, raw["fw2"], raw["fb2"]], jnp.float32)
    assert blk.shape == (BLK_LEN,)

    wf = (raw["w1t"] @ raw["w2t"]).astype(jnp.float32)             # (8, 2)
    bf = (raw["b1"] @ raw["w2t"] + raw["b2"]).astype(jnp.float32)  # (2,)
    return blk, wf.reshape(-1), bf                                 # row-major: [w*2 + c]


def drsn_reference(x, raw):
    """Pure-JAX mirror of the ORIGINAL (unfolded, unfused) module math, eval-mode BN."""
    h = x.reshape(x.shape[0], -1).astype(jnp.float32)        # (N, 8)

    def bn_eval(v, g, b, rm, rv):
        return (v - rm) / jnp.sqrt(jnp.float32(rv) + BN_EPS) * g + b

    def conv_bn_relu(v, cw, cb, g, b, rm, rv):
        return jnp.maximum(bn_eval(v * cw + cb, g, b, rm, rv), 0.0)

    def shrink(v):
        v_abs = jnp.abs(v)
        avg = jnp.mean(v_abs, axis=-1, keepdims=True)        # AdaptiveAvgPool2d(1)
        t = avg * raw["fw1"] + raw["fb1"]                    # Linear(1,1)
        t = bn_eval(t, raw["gf"], raw["bef"], raw["rmf"], raw["rvf"])
        t = jnp.maximum(t, 0.0)                              # ReLU
        t = jax.nn.sigmoid(t * raw["fw2"] + raw["fb2"])      # Linear(1,1) + Sigmoid
        return jnp.sign(v) * jnp.maximum(v_abs - avg * t, 0.0)

    def block(v):
        u = conv_bn_relu(v, raw["cw1"], raw["cb1"], raw["g1"], raw["be1"],
                         raw["rm1"], raw["rv1"])
        u = conv_bn_relu(u, raw["cw2"], raw["cb2"], raw["g2"], raw["be2"],
                         raw["rm2"], raw["rv2"])
        return jnp.maximum(v + shrink(u), 0.0)

    h = block(block(block(h)))
    y = h @ raw["w1t"] + raw["b1"]                           # linear1
    y = y @ raw["w2t"] + raw["b2"]                           # linear2
    return y


if __name__ == "__main__":
    raw = init_raw_params()
    params = fold_params(raw)

    # Small shape consistent with the module: batch=2, flattened width=8.
    x = jax.random.normal(jax.random.PRNGKey(0), (2, W_IN), dtype=jnp.float32)
    out = drsn_forward(x, params)
    jax.block_until_ready(out)
    ref = drsn_reference(x, raw)
    assert out.shape == (2, N_OUT), out.shape
    assert jnp.allclose(out, ref, atol=1e-5, rtol=1e-5), (out, ref)

    # Also exercise the multi-tile parallel grid path (padding + several blocks).
    xb = jax.random.normal(jax.random.PRNGKey(1), (2500, W_IN), dtype=jnp.float32)
    outb = drsn_forward(xb, params)
    jax.block_until_ready(outb)
    refb = drsn_reference(xb, raw)
    assert outb.shape == (2500, N_OUT), outb.shape
    assert jnp.allclose(outb, refb, atol=1e-5, rtol=1e-5)

    print("KERNEL_OK")
</pallas_src>

<mosaic_0001>
module attributes {stable_mosaic.version = 11 : i64} {
  func.func @drsn_kernel(%arg0: i32, %arg1: memref<8xf32, #tpu.memory_space<smem>>, %arg2: memref<16xf32, #tpu.memory_space<smem>>, %arg3: memref<2xf32, #tpu.memory_space<smem>>, %arg4: memref<8x128xf32, #tpu.memory_space<vmem>>, %arg5: memref<2x128xf32, #tpu.memory_space<vmem>>) attributes {dimension_semantics = [#tpu.dimension_semantics<parallel>], iteration_bounds = array<i64: 1>, scalar_prefetch = 0 : i64, scratch_operands = 0 : i64, tpu.core_type = #tpu.core_type<tc>, window_params = [{transform_indices = @transform_0, window_bounds = array<i64: 8>}, {transform_indices = @transform_1, window_bounds = array<i64: 16>}, {transform_indices = @transform_2, window_bounds = array<i64: 2>}, {transform_indices = @transform_3, window_bounds = array<i64: 8, 128>}, {transform_indices = @transform_4, window_bounds = array<i64: 2, 128>}]} {
    %c0 = arith.constant 0 : index
    %c0_0 = arith.constant 0 : index
    %0 = vector.load %arg4[%c0, %c0_0] : memref<8x128xf32, #tpu.memory_space<vmem>>, vector<8x128xf32>
    %c0_1 = arith.constant 0 : index
    %1 = memref.load %arg1[%c0_1] : memref<8xf32, #tpu.memory_space<smem>>
    %c1 = arith.constant 1 : index
    %2 = memref.load %arg1[%c1] : memref<8xf32, #tpu.memory_space<smem>>
    %c2 = arith.constant 2 : index
    %3 = memref.load %arg1[%c2] : memref<8xf32, #tpu.memory_space<smem>>
    %c3 = arith.constant 3 : index
    %4 = memref.load %arg1[%c3] : memref<8xf32, #tpu.memory_space<smem>>
    %c4 = arith.constant 4 : index
    %5 = memref.load %arg1[%c4] : memref<8xf32, #tpu.memory_space<smem>>
    %c5 = arith.constant 5 : index
    %6 = memref.load %arg1[%c5] : memref<8xf32, #tpu.memory_space<smem>>
    %c6 = arith.constant 6 : index
    %7 = memref.load %arg1[%c6] : memref<8xf32, #tpu.memory_space<smem>>
    %c7 = arith.constant 7 : index
    %8 = memref.load %arg1[%c7] : memref<8xf32, #tpu.memory_space<smem>>
    %9 = vector.broadcast %1 : f32 to vector<8x128xf32>
    %10 = arith.mulf %0, %9 : vector<8x128xf32>
    %11 = vector.broadcast %2 : f32 to vector<8x128xf32>
    %12 = arith.addf %10, %11 : vector<8x128xf32>
    %cst = arith.constant 0.000000e+00 : f32
    %13 = vector.broadcast %cst : f32 to vector<8x128xf32>
    %14 = arith.maximumf %12, %13 : vector<8x128xf32>
    %15 = vector.broadcast %3 : f32 to vector<8x128xf32>
    %16 = arith.mulf %14, %15 : vector<8x128xf32>
    %17 = vector.broadcast %4 : f32 to vector<8x128xf32>
    %18 = arith.addf %16, %17 : vector<8x128xf32>
    %cst_2 = arith.constant 0.000000e+00 : f32
    %19 = vector.broadcast %cst_2 : f32 to vector<8x128xf32>
    %20 = arith.maximumf %18, %19 : vector<8x128xf32>
    %cst_3 = arith.constant dense<0.000000e+00> : vector<128xf32>
    %21 = vector.multi_reduction <add>, %20, %cst_3 [0] : vector<8x128xf32> to vector<128xf32>
    %22 = vector.shape_cast %21 : vector<128xf32> to vector<1x128xf32>
    %cst_4 = arith.constant 8.000000e+00 : f32
    %23 = vector.broadcast %cst_4 : f32 to vector<1x128xf32>
    %24 = arith.divf %22, %23 : vector<1x128xf32>
    %25 = vector.broadcast %5 : f32 to vector<1x128xf32>
    %26 = arith.mulf %24, %25 : vector<1x128xf32>
    %27 = vector.broadcast %6 : f32 to vector<1x128xf32>
    %28 = arith.addf %26, %27 : vector<1x128xf32>
    %cst_5 = arith.constant 0.000000e+00 : f32
    %29 = vector.broadcast %cst_5 : f32 to vector<1x128xf32>
    %30 = arith.maximumf %28, %29 : vector<1x128xf32>
    %31 = vector.broadcast %7 : f32 to vector<1x128xf32>
    %32 = arith.mulf %30, %31 : vector<1x128xf32>
    %33 = vector.broadcast %8 : f32 to vector<1x128xf32>
    %34 = arith.addf %32, %33 : vector<1x128xf32>
    %cst_6 = arith.constant 0.000000e+00 : f32
    %35 = vector.broadcast %cst_6 : f32 to vector<1x128xf32>
    %36 = arith.subf %35, %34 : vector<1x128xf32>
    %37 = math.exp %36 : vector<1x128xf32>
    %cst_7 = arith.constant 1.000000e+00 : f32
    %38 = vector.broadcast %cst_7 : f32 to vector<1x128xf32>
    %39 = arith.addf %38, %37 : vector<1x128xf32>
    %cst_8 = arith.constant 1.000000e+00 : f32
    %40 = vector.broadcast %cst_8 : f32 to vector<1x128xf32>
    %41 = arith.divf %40, %39 : vector<1x128xf32>
    %42 = arith.mulf %24, %41 : vector<1x128xf32>
    %43 = vector.broadcast %42 : vector<1x128xf32> to vector<8x128xf32>
    %44 = arith.subf %20, %43 : vector<8x128xf32>
    %cst_9 = arith.constant 0.000000e+00 : f32
    %45 = vector.broadcast %cst_9 : f32 to vector<8x128xf32>
    %46 = arith.maximumf %44, %45 : vector<8x128xf32>
    %47 = arith.addf %0, %46 : vector<8x128xf32>
    %cst_10 = arith.constant 0.000000e+00 : f32
    %48 = vector.broadcast %cst_10 : f32 to vector<8x128xf32>
    %49 = arith.maximumf %47, %48 : vector<8x128xf32>
    %50 = vector.broadcast %1 : f32 to vector<8x128xf32>
    %51 = arith.mulf %49, %50 : vector<8x128xf32>
    %52 = vector.broadcast %2 : f32 to vector<8x128xf32>
    %53 = arith.addf %51, %52 : vector<8x128xf32>
    %cst_11 = arith.constant 0.000000e+00 : f32
    %54 = vector.broadcast %cst_11 : f32 to vector<8x128xf32>
    %55 = arith.maximumf %53, %54 : vector<8x128xf32>
    %56 = vector.broadcast %3 : f32 to vector<8x128xf32>
    %57 = arith.mulf %55, %56 : vector<8x128xf32>
    %58 = vector.broadcast %4 : f32 to vector<8x128xf32>
    %59 = arith.addf %57, %58 : vector<8x128xf32>
    %cst_12 = arith.constant 0.000000e+00 : f32
    %60 = vector.broadcast %cst_12 : f32 to vector<8x128xf32>
    %61 = arith.maximumf %59, %60 : vector<8x128xf32>
    %cst_13 = arith.constant dense<0.000000e+00> : vector<128xf32>
    %62 = vector.multi_reduction <add>, %61, %cst_13 [0] : vector<8x128xf32> to vector<128xf32>
    %63 = vector.shape_cast %62 : vector<128xf32> to vector<1x128xf32>
    %cst_14 = arith.constant 8.000000e+00 : f32
    %64 = vector.broadcast %cst_14 : f32 to vector<1x128xf32>
    %65 = arith.divf %63, %64 : vector<1x128xf32>
    %66 = vector.broadcast %5 : f32 to vector<1x128xf32>
    %67 = arith.mulf %65, %66 : vector<1x128xf32>
    %68 = vector.broadcast %6 : f32 to vector<1x128xf32>
    %69 = arith.addf %67, %68 : vector<1x128xf32>
    %cst_15 = arith.constant 0.000000e+00 : f32
    %70 = vector.broadcast %cst_15 : f32 to vector<1x128xf32>
    %71 = arith.maximumf %69, %70 : vector<1x128xf32>
    %72 = vector.broadcast %7 : f32 to vector<1x128xf32>
    %73 = arith.mulf %71, %72 : vector<1x128xf32>
    %74 = vector.broadcast %8 : f32 to vector<1x128xf32>
    %75 = arith.addf %73, %74 : vector<1x128xf32>
    %cst_16 = arith.constant 0.000000e+00 : f32
    %76 = vector.broadcast %cst_16 : f32 to vector<1x128xf32>
    %77 = arith.subf %76, %75 : vector<1x128xf32>
    %78 = math.exp %77 : vector<1x128xf32>
    %cst_17 = arith.constant 1.000000e+00 : f32
    %79 = vector.broadcast %cst_17 : f32 to vector<1x128xf32>
    %80 = arith.addf %79, %78 : vector<1x128xf32>
    %cst_18 = arith.constant 1.000000e+00 : f32
    %81 = vector.broadcast %cst_18 : f32 to vector<1x128xf32>
    %82 = arith.divf %81, %80 : vector<1x128xf32>
    %83 = arith.mulf %65, %82 : vector<1x128xf32>
    %84 = vector.broadcast %83 : vector<1x128xf32> to vector<8x128xf32>
    %85 = arith.subf %61, %84 : vector<8x128xf32>
    %cst_19 = arith.constant 0.000000e+00 : f32
    %86 = vector.broadcast %cst_19 : f32 to vector<8x128xf32>
    %87 = arith.maximumf %85, %86 : vector<8x128xf32>
    %88 = arith.addf %49, %87 : vector<8x128xf32>
    %cst_20 = arith.constant 0.000000e+00 : f32
    %89 = vector.broadcast %cst_20 : f32 to vector<8x128xf32>
    %90 = arith.maximumf %88, %89 : vector<8x128xf32>
    %91 = vector.broadcast %1 : f32 to vector<8x128xf32>
    %92 = arith.mulf %90, %91 : vector<8x128xf32>
    %93 = vector.broadcast %2 : f32 to vector<8x128xf32>
    %94 = arith.addf %92, %93 : vector<8x128xf32>
    %cst_21 = arith.constant 0.000000e+00 : f32
    %95 = vector.broadcast %cst_21 : f32 to vector<8x128xf32>
    %96 = arith.maximumf %94, %95 : vector<8x128xf32>
    %97 = vector.broadcast %3 : f32 to vector<8x128xf32>
    %98 = arith.mulf %96, %97 : vector<8x128xf32>
    %99 = vector.broadcast %4 : f32 to vector<8x128xf32>
    %100 = arith.addf %98, %99 : vector<8x128xf32>
    %cst_22 = arith.constant 0.000000e+00 : f32
    %101 = vector.broadcast %cst_22 : f32 to vector<8x128xf32>
    %102 = arith.maximumf %100, %101 : vector<8x128xf32>
    %cst_23 = arith.constant dense<0.000000e+00> : vector<128xf32>
    %103 = vector.multi_reduction <add>, %102, %cst_23 [0] : vector<8x128xf32> to vector<128xf32>
    %104 = vector.shape_cast %103 : vector<128xf32> to vector<1x128xf32>
    %cst_24 = arith.constant 8.000000e+00 : f32
    %105 = vector.broadcast %cst_24 : f32 to vector<1x128xf32>
    %106 = arith.divf %104, %105 : vector<1x128xf32>
    %107 = vector.broadcast %5 : f32 to vector<1x128xf32>
    %108 = arith.mulf %106, %107 : vector<1x128xf32>
    %109 = vector.broadcast %6 : f32 to vector<1x128xf32>
    %110 = arith.addf %108, %109 : vector<1x128xf32>
    %cst_25 = arith.constant 0.000000e+00 : f32
    %111 = vector.broadcast %cst_25 : f32 to vector<1x128xf32>
    %112 = arith.maximumf %110, %111 : vector<1x128xf32>
    %113 = vector.broadcast %7 : f32 to vector<1x128xf32>
    %114 = arith.mulf %112, %113 : vector<1x128xf32>
    %115 = vector.broadcast %8 : f32 to vector<1x128xf32>
    %116 = arith.addf %114, %115 : vector<1x128xf32>
    %cst_26 = arith.constant 0.000000e+00 : f32
    %117 = vector.broadcast %cst_26 : f32 to vector<1x128xf32>
    %118 = arith.subf %117, %116 : vector<1x128xf32>
    %119 = math.exp %118 : vector<1x128xf32>
    %cst_27 = arith.constant 1.000000e+00 : f32
    %120 = vector.broadcast %cst_27 : f32 to vector<1x128xf32>
    %121 = arith.addf %120, %119 : vector<1x128xf32>
    %cst_28 = arith.constant 1.000000e+00 : f32
    %122 = vector.broadcast %cst_28 : f32 to vector<1x128xf32>
    %123 = arith.divf %122, %121 : vector<1x128xf32>
    %124 = arith.mulf %106, %123 : vector<1x128xf32>
    %125 = vector.broadcast %124 : vector<1x128xf32> to vector<8x128xf32>
    %126 = arith.subf %102, %125 : vector<8x128xf32>
    %cst_29 = arith.constant 0.000000e+00 : f32
    %127 = vector.broadcast %cst_29 : f32 to vector<8x128xf32>
    %128 = arith.maximumf %126, %127 : vector<8x128xf32>
    %129 = arith.addf %90, %128 : vector<8x128xf32>
    %cst_30 = arith.constant 0.000000e+00 : f32
    %130 = vector.broadcast %cst_30 : f32 to vector<8x128xf32>
    %131 = arith.maximumf %129, %130 : vector<8x128xf32>
    %132 = vector.extract_strided_slice %131 {offsets = [0, 0], sizes = [1, 128], strides = [1, 1]} : vector<8x128xf32> to vector<1x128xf32>
    %133 = vector.extract_strided_slice %131 {offsets = [1, 0], sizes = [1, 128], strides = [1, 1]} : vector<8x128xf32> to vector<1x128xf32>
    %134 = vector.extract_strided_slice %131 {offsets = [2, 0], sizes = [1, 128], strides = [1, 1]} : vector<8x128xf32> to vector<1x128xf32>
    %135 = vector.extract_strided_slice %131 {offsets = [3, 0], sizes = [1, 128], strides = [1, 1]} : vector<8x128xf32> to vector<1x128xf32>
    %136 = vector.extract_strided_slice %131 {offsets = [4, 0], sizes = [1, 128], strides = [1, 1]} : vector<8x128xf32> to vector<1x128xf32>
    %137 = vector.extract_strided_slice %131 {offsets = [5, 0], sizes = [1, 128], strides = [1, 1]} : vector<8x128xf32> to vector<1x128xf32>
    %138 = vector.extract_strided_slice %131 {offsets = [6, 0], sizes = [1, 128], strides = [1, 1]} : vector<8x128xf32> to vector<1x128xf32>
    %139 = vector.extract_strided_slice %131 {offsets = [7, 0], sizes = [1, 128], strides = [1, 1]} : vector<8x128xf32> to vector<1x128xf32>
    %c0_31 = arith.constant 0 : index
    %140 = memref.load %arg2[%c0_31] : memref<16xf32, #tpu.memory_space<smem>>
    %141 = vector.broadcast %140 : f32 to vector<1x128xf32>
    %142 = arith.mulf %132, %141 : vector<1x128xf32>
    %c0_32 = arith.constant 0 : index
    %143 = memref.load %arg3[%c0_32] : memref<2xf32, #tpu.memory_space<smem>>
    %144 = vector.broadcast %143 : f32 to vector<1x128xf32>
    %145 = arith.addf %142, %144 : vector<1x128xf32>
    %c2_33 = arith.constant 2 : index
    %146 = memref.load %arg2[%c2_33] : memref<16xf32, #tpu.memory_space<smem>>
    %147 = vector.broadcast %146 : f32 to vector<1x128xf32>
    %148 = arith.mulf %133, %147 : vector<1x128xf32>
    %149 = arith.addf %145, %148 : vector<1x128xf32>
    %c4_34 = arith.constant 4 : index
    %150 = memref.load %arg2[%c4_34] : memref<16xf32, #tpu.memory_space<smem>>
    %151 = vector.broadcast %150 : f32 to vector<1x128xf32>
    %152 = arith.mulf %134, %151 : vector<1x128xf32>
    %153 = arith.addf %149, %152 : vector<1x128xf32>
    %c6_35 = arith.constant 6 : index
    %154 = memref.load %arg2[%c6_35] : memref<16xf32, #tpu.memory_space<smem>>
    %155 = vector.broadcast %154 : f32 to vector<1x128xf32>
    %156 = arith.mulf %135, %155 : vector<1x128xf32>
    %157 = arith.addf %153, %156 : vector<1x128xf32>
    %c8 = arith.constant 8 : index
    %158 = memref.load %arg2[%c8] : memref<16xf32, #tpu.memory_space<smem>>
    %159 = vector.broadcast %158 : f32 to vector<1x128xf32>
    %160 = arith.mulf %136, %159 : vector<1x128xf32>
    %161 = arith.addf %157, %160 : vector<1x128xf32>
    %c10 = arith.constant 10 : index
    %162 = memref.load %arg2[%c10] : memref<16xf32, #tpu.memory_space<smem>>
    %163 = vector.broadcast %162 : f32 to vector<1x128xf32>
    %164 = arith.mulf %137, %163 : vector<1x128xf32>
    %165 = arith.addf %161, %164 : vector<1x128xf32>
    %c12 = arith.constant 12 : index
    %166 = memref.load %arg2[%c12] : memref<16xf32, #tpu.memory_space<smem>>
    %167 = vector.broadcast %166 : f32 to vector<1x128xf32>
    %168 = arith.mulf %138, %167 : vector<1x128xf32>
    %169 = arith.addf %165, %168 : vector<1x128xf32>
    %c14 = arith.constant 14 : index
    %170 = memref.load %arg2[%c14] : memref<16xf32, #tpu.memory_space<smem>>
    %171 = vector.broadcast %170 : f32 to vector<1x128xf32>
    %172 = arith.mulf %139, %171 : vector<1x128xf32>
    %173 = arith.addf %169, %172 : vector<1x128xf32>
    %c1_36 = arith.constant 1 : index
    %174 = memref.load %arg2[%c1_36] : memref<16xf32, #tpu.memory_space<smem>>
    %175 = vector.broadcast %174 : f32 to vector<1x128xf32>
    %176 = arith.mulf %132, %175 : vector<1x128xf32>
    %c1_37 = arith.constant 1 : index
    %177 = memref.load %arg3[%c1_37] : memref<2xf32, #tpu.memory_space<smem>>
    %178 = vector.broadcast %177 : f32 to vector<1x128xf32>
    %179 = arith.addf %176, %178 : vector<1x128xf32>
    %c3_38 = arith.constant 3 : index
    %180 = memref.load %arg2[%c3_38] : memref<16xf32, #tpu.memory_space<smem>>
    %181 = vector.broadcast %180 : f32 to vector<1x128xf32>
    %182 = arith.mulf %133, %181 : vector<1x128xf32>
    %183 = arith.addf %179, %182 : vector<1x128xf32>
    %c5_39 = arith.constant 5 : index
    %184 = memref.load %arg2[%c5_39] : memref<16xf32, #tpu.memory_space<smem>>
    %185 = vector.broadcast %184 : f32 to vector<1x128xf32>
    %186 = arith.mulf %134, %185 : vector<1x128xf32>
    %187 = arith.addf %183, %186 : vector<1x128xf32>
    %c7_40 = arith.constant 7 : index
    %188 = memref.load %arg2[%c7_40] : memref<16xf32, #tpu.memory_space<smem>>
    %189 = vector.broadcast %188 : f32 to vector<1x128xf32>
    %190 = arith.mulf %135, %189 : vector<1x128xf32>
    %191 = arith.addf %187, %190 : vector<1x128xf32>
    %c9 = arith.constant 9 : index
    %192 = memref.load %arg2[%c9] : memref<16xf32, #tpu.memory_space<smem>>
    %193 = vector.broadcast %192 : f32 to vector<1x128xf32>
    %194 = arith.mulf %136, %193 : vector<1x128xf32>
    %195 = arith.addf %191, %194 : vector<1x128xf32>
    %c11 = arith.constant 11 : index
    %196 = memref.load %arg2[%c11] : memref<16xf32, #tpu.memory_space<smem>>
    %197 = vector.broadcast %196 : f32 to vector<1x128xf32>
    %198 = arith.mulf %137, %197 : vector<1x128xf32>
    %199 = arith.addf %195, %198 : vector<1x128xf32>
    %c13 = arith.constant 13 : index
    %200 = memref.load %arg2[%c13] : memref<16xf32, #tpu.memory_space<smem>>
    %201 = vector.broadcast %200 : f32 to vector<1x128xf32>
    %202 = arith.mulf %138, %201 : vector<1x128xf32>
    %203 = arith.addf %199, %202 : vector<1x128xf32>
    %c15 = arith.constant 15 : index
    %204 = memref.load %arg2[%c15] : memref<16xf32, #tpu.memory_space<smem>>
    %205 = vector.broadcast %204 : f32 to vector<1x128xf32>
    %206 = arith.mulf %139, %205 : vector<1x128xf32>
    %207 = arith.addf %203, %206 : vector<1x128xf32>
    %208 = tpu.concatenate %173, %207 in 0 : vector<1x128xf32>, vector<1x128xf32> -> vector<2x128xf32>
    %c0_41 = arith.constant 0 : index
    %c0_42 = arith.constant 0 : index
    %209 = vector.load %arg5[%c0_41, %c0_42] : memref<2x128xf32, #tpu.memory_space<vmem>>, vector<2x128xf32>
    tpu.vector_store %arg5[%c0_41, %c0_42], %208 {strides = array<i32>} : memref<2x128xf32, #tpu.memory_space<vmem>>, vector<2x128xf32>,
    return
  }
  func.func @transform_0(%arg0: i32) -> i32 {
    %c0_i32 = arith.constant 0 : i32
    %c0_i32_0 = arith.constant 0 : i32
    return %c0_i32 : i32
  }
  func.func @transform_1(%arg0: i32) -> i32 {
    %c0_i32 = arith.constant 0 : i32
    %c0_i32_0 = arith.constant 0 : i32
    return %c0_i32 : i32
  }
  func.func @transform_2(%arg0: i32) -> i32 {
    %c0_i32 = arith.constant 0 : i32
    %c0_i32_0 = arith.constant 0 : i32
    return %c0_i32 : i32
  }
  func.func @transform_3(%arg0: i32) -> (i32, i32) {
    %c0_i32 = arith.constant 0 : i32
    %c0_i32_0 = arith.constant 0 : i32
    return %c0_i32, %arg0 : i32, i32
  }
  func.func @transform_4(%arg0: i32) -> (i32, i32) {
    %c0_i32 = arith.constant 0 : i32
    %c0_i32_0 = arith.constant 0 : i32
    return %c0_i32, %arg0 : i32, i32
  }
}

</mosaic_0001>

<llo_original>
// kernel: tpu_custom_call.1
$region0: #{tpu_custom_call.1}
  #allocation0 [shape = 'u32[]', space=smem, size = 0x4, offset = 0x4, fixed_abs, tag = 'smem constant byte address 0x4 - core index']
  #allocation1 [shape = 'u32[72,128]{1,0:T(1,128)}', space=vmem, size = 0x9000, scoped, tag = 'internal scratch']
  %s0 = inlined_call_operand.hbm [shape: f32[8], index: 0, kind: input, shape index: {}]
  %s1 = inlined_call_operand.hbm [shape: f32[16], index: 1, kind: input, shape index: {}]
  %s2 = inlined_call_operand.vmem [shape: f32[2], index: 2, kind: input, shape index: {}]
  %s3 = inlined_call_operand.hbm [shape: f32[8,128], index: 3, kind: input, shape index: {}]
  %s4 = inlined_call_operand.hbm [shape: f32[2,128], index: 4, kind: output, shape index: {}]
  %s5 = sld [smem:[#allocation0]]
  $region42: #{tpu_custom_call.1} parent=0
    _
  %s7 = ssub.s32 1, %s5
  %s8 = scalar_select 0, %s7, %s5
  $region1: #{tpu_custom_call.1} parent=0
    #allocation2 [shape = 'u8[512]{0}', space=smem, size = 0x200, scoped, tag = 'input window, operand 0, single buffered']
    #allocation3 [shape = 's32[1]{0}', space=sflag, size = 0x4, scoped, tag = 'scoped memory for tpu_custom_call.1']
    #allocation4 [shape = 's32[1]{0}', space=sflag, size = 0x4, scoped, tag = 'scoped memory for tpu_custom_call.1']
    #allocation5 [shape = 's32[1]{0}', space=sflag, size = 0x4, scoped, tag = 'scoped memory for tpu_custom_call.1']
    #allocation6 [shape = 's32[1]{0}', space=sflag, size = 0x4, scoped, tag = 'scoped memory for tpu_custom_call.1']
    #allocation7 [shape = 'u8[512]{0}', space=smem, size = 0x200, scoped, tag = 'input window, operand 1, single buffered']
    #allocation8 [shape = 's32[1]{0}', space=sflag, size = 0x4, scoped, tag = 'scoped memory for tpu_custom_call.1']
    #allocation9 [shape = 'u8[512]{0}', space=smem, size = 0x200, scoped, tag = 'input window, operand 2, single buffered']
    #allocation10 [shape = 'u8[4096]{0}', space=vmem, size = 0x1000, scoped, tag = 'input window, operand 3, single buffered']
    #allocation11 [shape = 'u8[1024]{0}', space=vmem, size = 0x400, scoped, tag = 'output window, operand 0, single buffered']
    %9 = vsyncpa [#allocation5], 0
    %10 = vsyncpa [#allocation8], 0
    %11 = vsyncpa [#allocation6], 0
    %12 = vsyncpa [#allocation3], 0
    %13 = vsyncpa [#allocation4], 0
    // Predicated region
    $region2: #{tpu_custom_call.1} parent=1 // pred_check
      _
    $region3: #{tpu_custom_call.1} parent=1 // pred_check_branch
      %15 = sbr.rel (0) target = $region5
    $region4: #{tpu_custom_call.1} parent=1 // pred_region
      %17 = vsyncadd [#allocation5], 0
      %s19 = sshll.u32 %s0, 4
      %s20 = int_to_ptr.hbm [resolvable:$true] %s19
      %22 = dma.hbm_to_smem %s20, 16, [#allocation2], [#allocation5]
    $region5: #{tpu_custom_call.1} parent=1 // pred_fallthru
      _
    // Predicated region
    $region6: #{tpu_custom_call.1} parent=1 // pred_check
      _
    $region7: #{tpu_custom_call.1} parent=1 // pred_check_branch
      %24 = sbr.rel (0) target = $region9
    $region8: #{tpu_custom_call.1} parent=1 // pred_region
      %26 = vsyncadd [#allocation8], 0
      %s28 = sshll.u32 %s1, 4
      %s29 = int_to_ptr.hbm [resolvable:$true] %s28
      %31 = dma.hbm_to_smem %s29, 16, [#allocation7], [#allocation8]
    $region9: #{tpu_custom_call.1} parent=1 // pred_fallthru
      _
    // Predicated region
    $region10: #{tpu_custom_call.1} parent=1 // pred_check
      _
    $region11: #{tpu_custom_call.1} parent=1 // pred_check_branch
      %33 = sbr.rel (0) target = $region13
    $region12: #{tpu_custom_call.1} parent=1 // pred_region
      %35 = vsyncadd [#allocation6], 0
      %s37 = sshll.u32 %s2, 4
      %s38 = int_to_ptr.vmem [resolvable:$true] %s37
      %40 = dma.vmem_to_smem %s38, 16, [#allocation9], [#allocation6]
    $region13: #{tpu_custom_call.1} parent=1 // pred_fallthru
      _
    // Predicated region
    $region14: #{tpu_custom_call.1} parent=1 // pred_check
      _
    $region15: #{tpu_custom_call.1} parent=1 // pred_check_branch
      %42 = sbr.rel (0) target = $region17
    $region16: #{tpu_custom_call.1} parent=1 // pred_region
      %44 = vsyncadd [#allocation3], 0
      %s46 = sshll.u32 %s3, 4
      %s47 = int_to_ptr.hbm [resolvable:$true] %s46
      %s48 = sshll.u32 [#allocation10], 4
      %s49 = int_to_ptr.vmem [resolvable:$true] %s48
      %51 = dma.hbm_to_vmem [thread:$0]  %s47, 128, %s49, [#allocation3]
    $region17: #{tpu_custom_call.1} parent=1 // pred_fallthru
      _
    // Predicated region
    $region18: #{tpu_custom_call.1} parent=1 // pred_check
      _
    $region19: #{tpu_custom_call.1} parent=1 // pred_check_branch
      %53 = sbr.rel (0) target = $region21
    $region20: #{tpu_custom_call.1} parent=1 // pred_region
      %55 = dma.done [#allocation5], 16
    $region21: #{tpu_custom_call.1} parent=1 // pred_fallthru
      _
    // Predicated region
    $region22: #{tpu_custom_call.1} parent=1 // pred_check
      _
    $region23: #{tpu_custom_call.1} parent=1 // pred_check_branch
      %57 = sbr.rel (0) target = $region25
    $region24: #{tpu_custom_call.1} parent=1 // pred_region
      %59 = dma.done [#allocation8], 16
    $region25: #{tpu_custom_call.1} parent=1 // pred_fallthru
      _
    // Predicated region
    $region26: #{tpu_custom_call.1} parent=1 // pred_check
      _
    $region27: #{tpu_custom_call.1} parent=1 // pred_check_branch
      %61 = sbr.rel (0) target = $region29
    $region28: #{tpu_custom_call.1} parent=1 // pred_region
      %63 = dma.done [#allocation6], 16
    $region29: #{tpu_custom_call.1} parent=1 // pred_fallthru
      _
    // Predicated region
    $region30: #{tpu_custom_call.1} parent=1 // pred_check
      _
    $region31: #{tpu_custom_call.1} parent=1 // pred_check_branch
      %65 = sbr.rel (0) target = $region33
    $region32: #{tpu_custom_call.1} parent=1 // pred_region
      %67 = dma.done [#allocation3], 128
    $region33: #{tpu_custom_call.1} parent=1 // pred_fallthru
      _
    %68 = sfence
    %v69 = vld [vmem:[#allocation10] sm:$0xff]
    %s70 = sld [smem:[#allocation2]]
    %s71 = sld [smem:[#allocation2 + $0x1]]
    %s72 = sld [smem:[#allocation2 + $0x2]]
    %s73 = sld [smem:[#allocation2 + $0x3]]
    %s74 = sld [smem:[#allocation2 + $0x4]]
    %s75 = sld [smem:[#allocation2 + $0x5]]
    %s76 = sld [smem:[#allocation2 + $0x6]]
    %s77 = sld [smem:[#allocation2 + $0x7]]
    %v78 = vstv %s70
    %v79 = vmul.f32 %v69, %v78
    %v80 = vstv %s71
    %v81 = vadd.f32 %v79, %v80
    %v82 = vmax.f32 %v81, 0.0
    %v83 = vstv %s72
    %v84 = vmul.f32 %v82, %v83
    %v85 = vstv %s73
    %v86 = vadd.f32 %v84, %v85
    %v87 = vmax.f32 %v86, 0.0
    %v88 = vrot.slane %v87, 4
    %v89 = vadd.f32 %v87, %v88
    %v90 = vrot.slane %v89, 2
    %v91 = vadd.f32 %v89, %v90
    %v92 = vrot.slane %v91, 1
    %v93 = vadd.f32 %v91, %v92
    %v94 = vrcp.pop 8.0
    %v95 = vmul.f32 8.0, %v94
    %v96 = vsub.f32 1.0, %v95
    %v97 = vmul.f32 %v94, %v96
    %v98 = vadd.f32 %v94, %v97
    %vm99 = vweird.f32 %v94
    %v100 = vsel %vm99, %v94, %v98
    %v101 = vmul.f32 %v93, %v100
    %v102 = vstv %s74
    %v103 = vmul.f32 %v101, %v102
    %v104 = vstv %s75
    %v105 = vadd.f32 %v103, %v104
    %v106 = vmax.f32 %v105, 0.0
    %v107 = vstv %s76
    %v108 = vmul.f32 %v106, %v107
    %v109 = vstv %s77
    %v110 = vadd.f32 %v108, %v109
    %v111 = vsub.f32 0.0, %v110
    %v112 = vmul.f32 %v111, 1.442695
    %v113 = vpow.pop %v112
    %v114 = vadd.f32 %v113, 1.0
    %v115 = vrcp.pop %v114
    %v116 = vmul.f32 %v114, %v115
    %v117 = vsub.f32 1.0, %v116
    %v118 = vmul.f32 %v115, %v117
    %v119 = vadd.f32 %v115, %v118
    %vm120 = vweird.f32 %v114
    %vm121 = vweird.f32 %v115
    %vm122 = vmor %vm120, %vm121
    %v123 = vsel %vm122, %v115, %v119
    %v124 = vand.u32 2147483647, %v114
    %vm125 = vcmp.eq.f32.partialorder %v124, 8.507059e+37
    %v126 = vand.u32 %v114, 2147483648
    %v127 = vor.u32 1.1754944e-38, %v126
    %v128 = vsel %vm125, %v127, %v123
    %v129 = vmul.f32 1.0, %v128
    %v130 = vmul.f32 %v101, %v129
    %v131 = vsub.f32 %v87, %v130
    %v132 = vmax.f32 %v131, 0.0
    %v133 = vadd.f32 %v69, %v132
    %v134 = vmax.f32 %v133, 0.0
    %v135 = vmul.f32 %v134, %v78
    %v136 = vadd.f32 %v135, %v80
    %v137 = vmax.f32 %v136, 0.0
    %v138 = vmul.f32 %v137, %v83
    %v139 = vadd.f32 %v138, %v85
    %v140 = vmax.f32 %v139, 0.0
    %v141 = vrot.slane %v140, 4
    %v142 = vadd.f32 %v140, %v141
    %v143 = vrot.slane %v142, 2
    %v144 = vadd.f32 %v142, %v143
    %v145 = vrot.slane %v144, 1
    %v146 = vadd.f32 %v144, %v145
    %v147 = vmul.f32 %v146, %v100
    %v148 = vmul.f32 %v147, %v102
    %v149 = vadd.f32 %v148, %v104
    %v150 = vmax.f32 %v149, 0.0
    %v151 = vmul.f32 %v150, %v107
    %v152 = vadd.f32 %v151, %v109
    %v153 = vsub.f32 0.0, %v152
    %v154 = vmul.f32 %v153, 1.442695
    %v155 = vpow.pop %v154
    %v156 = vadd.f32 %v155, 1.0
    %v157 = vrcp.pop %v156
    %v158 = vmul.f32 %v156, %v157
    %v159 = vsub.f32 1.0, %v158
    %v160 = vmul.f32 %v157, %v159
    %v161 = vadd.f32 %v157, %v160
    %vm162 = vweird.f32 %v156
    %vm163 = vweird.f32 %v157
    %vm164 = vmor %vm162, %vm163
    %v165 = vsel %vm164, %v157, %v161
    %v166 = vand.u32 2147483647, %v156
    %vm167 = vcmp.eq.f32.partialorder %v166, 8.507059e+37
    %v168 = vand.u32 %v156, 2147483648
    %v169 = vor.u32 1.1754944e-38, %v168
    %v170 = vsel %vm167, %v169, %v165
    %v171 = vmul.f32 1.0, %v170
    %v172 = vmul.f32 %v147, %v171
    %v173 = vsub.f32 %v140, %v172
    %v174 = vmax.f32 %v173, 0.0
    %v175 = vadd.f32 %v134, %v174
    %v176 = vmax.f32 %v175, 0.0
    %v177 = vmul.f32 %v176, %v78
    %v178 = vadd.f32 %v177, %v80
    %v179 = vmax.f32 %v178, 0.0
    %v180 = vmul.f32 %v179, %v83
    %v181 = vadd.f32 %v180, %v85
    %v182 = vmax.f32 %v181, 0.0
    %v183 = vrot.slane %v182, 4
    %v184 = vadd.f32 %v182, %v183
    %v185 = vrot.slane %v184, 2
    %v186 = vadd.f32 %v184, %v185
    %v187 = vrot.slane %v186, 1
    %v188 = vadd.f32 %v186, %v187
    %v189 = vmul.f32 %v188, %v100
    %v190 = vmul.f32 %v189, %v102
    %v191 = vadd.f32 %v190, %v104
    %v192 = vmax.f32 %v191, 0.0
    %v193 = vmul.f32 %v192, %v107
    %v194 = vadd.f32 %v193, %v109
    %v195 = vsub.f32 0.0, %v194
    %v196 = vmul.f32 %v195, 1.442695
    %v197 = vpow.pop %v196
    %v198 = vadd.f32 %v197, 1.0
    %v199 = vrcp.pop %v198
    %v200 = vmul.f32 %v198, %v199
    %v201 = vsub.f32 1.0, %v200
    %v202 = vmul.f32 %v199, %v201
    %v203 = vadd.f32 %v199, %v202
    %vm204 = vweird.f32 %v198
    %vm205 = vweird.f32 %v199
    %vm206 = vmor %vm204, %vm205
    %v207 = vsel %vm206, %v199, %v203
    %v208 = vand.u32 2147483647, %v198
    %vm209 = vcmp.eq.f32.partialorder %v208, 8.507059e+37
    %v210 = vand.u32 %v198, 2147483648
    %v211 = vor.u32 1.1754944e-38, %v210
    %v212 = vsel %vm209, %v211, %v207
    %v213 = vmul.f32 1.0, %v212
    %v214 = vmul.f32 %v189, %v213
    %v215 = vsub.f32 %v182, %v214
    %v216 = vmax.f32 %v215, 0.0
    %v217 = vadd.f32 %v176, %v216
    %v218 = vmax.f32 %v217, 0.0
    %s219 = sld [smem:[#allocation7]]
    %v220 = vstv %s219
    %v221 = vmul.f32 %v218, %v220
    %s222 = sld [smem:[#allocation9]]
    %v223 = vstv %s222
    %v224 = vadd.f32 %v221, %v223
    %s225 = sld [smem:[#allocation7 + $0x2]]
    %v226 = vstv %s225
    %v227 = vmul.f32 %v218, %v226
    %v229 = vrot.slane %v227, 1
    %v231 = vadd.f32 %v224, %v229
    %s232 = sld [smem:[#allocation7 + $0x4]]
    %v233 = vstv %s232
    %v234 = vmul.f32 %v218, %v233
    %v236 = vrot.slane %v234, 2
    %v238 = vadd.f32 %v231, %v236
    %s239 = sld [smem:[#allocation7 + $0x6]]
    %v240 = vstv %s239
    %v241 = vmul.f32 %v218, %v240
    %v243 = vrot.slane %v241, 3
    %v245 = vadd.f32 %v238, %v243
    %s246 = sld [smem:[#allocation7 + $0x8]]
    %v247 = vstv %s246
    %v248 = vmul.f32 %v218, %v247
    %v250 = vrot.slane %v248, 4
    %v252 = vadd.f32 %v245, %v250
    %s253 = sld [smem:[#allocation7 + $0xa]]
    %v254 = vstv %s253
    %v255 = vmul.f32 %v218, %v254
    %v257 = vrot.slane %v255, 5
    %v259 = vadd.f32 %v252, %v257
    %s260 = sld [smem:[#allocation7 + $0xc]]
    %v261 = vstv %s260
    %v262 = vmul.f32 %v218, %v261
    %v264 = vrot.slane %v262, 6
    %v266 = vadd.f32 %v259, %v264
    %s267 = sld [smem:[#allocation7 + $0xe]]
    %v268 = vstv %s267
    %v269 = vmul.f32 %v218, %v268
    %v271 = vrot.slane %v269, 7
    %v273 = vadd.f32 %v266, %v271
    %s274 = sld [smem:[#allocation7 + $0x1]]
    %v275 = vstv %s274
    %v276 = vmul.f32 %v218, %v275
    %s277 = sld [smem:[#allocation9 + $0x1]]
    %v278 = vstv %s277
    %v279 = vadd.f32 %v276, %v278
    %s280 = sld [smem:[#allocation7 + $0x3]]
    %v281 = vstv %s280
    %v282 = vmul.f32 %v218, %v281
    %v284 = vrot.slane %v282, 1
    %v286 = vadd.f32 %v279, %v284
    %s287 = sld [smem:[#allocation7 + $0x5]]
    %v288 = vstv %s287
    %v289 = vmul.f32 %v218, %v288
    %v291 = vrot.slane %v289, 2
    %v293 = vadd.f32 %v286, %v291
    %s294 = sld [smem:[#allocation7 + $0x7]]
    %v295 = vstv %s294
    %v296 = vmul.f32 %v218, %v295
    %v298 = vrot.slane %v296, 3
    %v300 = vadd.f32 %v293, %v298
    %s301 = sld [smem:[#allocation7 + $0x9]]
    %v302 = vstv %s301
    %v303 = vmul.f32 %v218, %v302
    %v305 = vrot.slane %v303, 4
    %v307 = vadd.f32 %v300, %v305
    %s308 = sld [smem:[#allocation7 + $0xb]]
    %v309 = vstv %s308
    %v310 = vmul.f32 %v218, %v309
    %v312 = vrot.slane %v310, 5
    %v314 = vadd.f32 %v307, %v312
    %s315 = sld [smem:[#allocation7 + $0xd]]
    %v316 = vstv %s315
    %v317 = vmul.f32 %v218, %v316
    %v319 = vrot.slane %v317, 6
    %v321 = vadd.f32 %v314, %v319
    %s322 = sld [smem:[#allocation7 + $0xf]]
    %v323 = vstv %s322
    %v324 = vmul.f32 %v218, %v323
    %v326 = vrot.slane %v324, 7
    %v328 = vadd.f32 %v321, %v326
    %v330 = vrot.slane %v328, 7
    %vm332 = vcmask 1040384
    %v333 = vsel %vm332, %v273, %v330
    %334 = vst [vmem:[#allocation11] sm:$0x3] %v333
    // Predicated region
    $region34: #{tpu_custom_call.1} parent=1 // pred_check
      _
    $region35: #{tpu_custom_call.1} parent=1 // pred_check_branch
      %336 = sbr.rel (0) target = $region37
    $region36: #{tpu_custom_call.1} parent=1 // pred_region
      %338 = vsyncadd [#allocation4], 0
      %s340 = sshll.u32 [#allocation11], 4
      %s341 = int_to_ptr.vmem [resolvable:$true] %s340
      %s342 = sshll.u32 %s4, 4
      %s343 = int_to_ptr.hbm [resolvable:$true] %s342
      %345 = dma.vmem_to_hbm [thread:$0]  %s341, 32, %s343, [#allocation4]
    $region37: #{tpu_custom_call.1} parent=1 // pred_fallthru
      _
    // Predicated region
    $region38: #{tpu_custom_call.1} parent=1 // pred_check
      _
    $region39: #{tpu_custom_call.1} parent=1 // pred_check_branch
      %347 = sbr.rel (0) target = $region41
    $region40: #{tpu_custom_call.1} parent=1 // pred_region
      %349 = dma.done [#allocation4], 32
    $region41: #{tpu_custom_call.1} parent=1 // pred_fallthru
      _
    %350 = vsyncpa [#allocation3], 1
    %351 = vsyncpa [#allocation4], 1
    %352 = vsyncpa [#allocation5], 1
    %353 = vsyncpa [#allocation8], 1
    %354 = vsyncpa [#allocation6], 1

</llo_original>
